<compile_context>
chip_gen: v7x
topology: tpu7x:2x2x1
jax: 0.10.0
libtpu: 0.0.40
codegen_flags: <defaults>
</compile_context>

<pallas_src>
import jax
import jax.numpy as jnp
import numpy as np
from jax.experimental import pallas as pl
from jax.experimental.pallas import tpu as pltpu


# --------------------------------------------------------------------------------------
# Kernel
# --------------------------------------------------------------------------------------
def _stft_matmul_kernel(frames_ref, basis_ref, out_ref):
    """One (i, j, k) grid step: out[i, j] (+)= frames[i, k] @ basis[k, j] via bf16x3."""
    k = pl.program_id(2)

    x_hi = frames_ref[0]          # (tm, tk) bf16
    x_lo = frames_ref[1]
    b_hi = basis_ref[0]           # (tk, tn) bf16
    b_lo = basis_ref[1]

    # 3-pass bf16 matmul with f32 accumulation (dropped lo*lo term ~2^-18 relative).
    acc = jnp.dot(x_hi, b_hi, preferred_element_type=jnp.float32)
    acc += jnp.dot(x_lo, b_hi, preferred_element_type=jnp.float32)
    acc += jnp.dot(x_hi, b_lo, preferred_element_type=jnp.float32)

    @pl.when(k == 0)
    def _():
        out_ref[...] = acc

    @pl.when(k > 0)
    def _():
        out_ref[...] += acc


# --------------------------------------------------------------------------------------
# Host-side helpers
# --------------------------------------------------------------------------------------
def _pad_to(n, m):
    return ((n + m - 1) // m) * m


def _vmem_capacity_bytes():
    try:
        info = pltpu.get_tpu_info()
        cap = int(getattr(info, "vmem_capacity_bytes", 0))
    except Exception:
        cap = 0
    return cap if cap > 0 else (64 << 20)       # conservative fallback (v7x per-TC size)


def _choose_tiles(M, W, n_fft, *, tm_max=512, tn_max=1024):
    cap = _vmem_capacity_bytes()
    budget = int(0.45 * cap)                    # double-buffered working-set budget

    # tn: multiple of 128 minimizing column padding; prefer larger tn on ties (better AI).
    w128 = _pad_to(W, 128)
    tn_cands = list(range(128, min(tn_max, w128) + 1, 128))
    tn = min(tn_cands, key=lambda c: (_pad_to(W, c), -c))
    Wp = _pad_to(W, tn)

    # tm: multiple of 128 (16-row floor for tiny problems) for clean bf16 sublane packing.
    if M >= 128:
        tm = min(tm_max, _pad_to(M, 128))
    else:
        tm = _pad_to(max(M, 16), 16)
    Mp = _pad_to(M, tm)

    # tk: as close to n_fft as the VMEM budget allows (fewer grid steps / no accumulator
    # round-trips); candidates divide the padded FFT length exactly, so Np never inflates.
    nf128 = _pad_to(n_fft, 128)
    tk_cands = [nf128]
    v = nf128
    while v % 256 == 0:
        v //= 2
        tk_cands.append(v)

    def step_bytes(tk_):
        # double-buffered: frames hi/lo (bf16) + basis hi/lo (bf16) + out block (f32)
        return 2 * (2 * tm * tk_ * 2 + 2 * tk_ * tn * 2 + tm * tn * 4)

    tk = tk_cands[-1]
    for cand in tk_cands:                       # descending
        if step_bytes(cand) <= budget:
            tk = cand
            break
    Np = _pad_to(n_fft, tk)

    # v7x megacore balance: prefer an even number of parallel (i, j) tiles.
    if ((Mp // tm) * (Wp // tn)) % 2 == 1 and tm >= 256 and M > tm // 2:
        tm //= 2                                # stays a multiple of 128
        Mp = _pad_to(M, tm)

    vmem_limit = int(min(cap, max(32 << 20, int(1.5 * step_bytes(tk)))))
    return tm, tn, tk, Mp, Wp, Np, vmem_limit


_BASIS_CACHE = {}


def _basis_hl(n_fft, Np, Wp):
    """(2, Np, Wp) bf16 device constant: window-folded onesided DFT basis, hi/lo stacked,
    real/imag column-interleaved (col 2k = w*cos, col 2k+1 = -w*sin). Built with numpy at
    trace time and cached, so no on-device cos/sin or padded f32 intermediates per call."""
    key = (n_fft, Np, Wp)
    if key not in _BASIS_CACHE:
        n_bins = n_fft // 2 + 1
        ni = np.arange(n_fft, dtype=np.int64)
        ki = np.arange(n_bins, dtype=np.int64)
        window = 0.5 - 0.5 * np.cos(2.0 * np.pi * ni / n_fft)      # periodic hann
        phase = (ni[:, None] * ki[None, :]) % n_fft                # exact integer reduction
        ang = (2.0 * np.pi / n_fft) * phase
        basis = np.stack([np.cos(ang), -np.sin(ang)], axis=-1)     # (n_fft, n_bins, 2)
        basis = (window[:, None, None] * basis).reshape(n_fft, 2 * n_bins).astype(np.float32)
        b_hi = basis.astype(jnp.bfloat16)
        b_lo = (basis - b_hi.astype(np.float32)).astype(jnp.bfloat16)
        packed = np.zeros((2, Np, Wp), dtype=jnp.bfloat16)
        packed[0, :n_fft, : 2 * n_bins] = b_hi
        packed[1, :n_fft, : 2 * n_bins] = b_lo
        _BASIS_CACHE[key] = jnp.asarray(packed)
    return _BASIS_CACHE[key]


# --------------------------------------------------------------------------------------
# Wrapper (matches torch.stft(center=False, onesided=True, hann window) semantics)
# --------------------------------------------------------------------------------------
def stft_pallas(x, n_fft=256, n_hop=64):
    """x: (nb_samples, nb_channels, nb_timesteps) f32
    -> (nb_samples, nb_channels, n_fft//2+1, nb_frames, 2) f32
    """
    B, C, T = x.shape
    n_bins = n_fft // 2 + 1
    n_frames = 1 + (T - n_fft) // n_hop          # center=False
    M = B * C * n_frames
    W = 2 * n_bins                               # interleaved real/imag columns

    tm, tn, tk, Mp, Wp, Np, vmem_limit = _choose_tiles(M, W, n_fft)

    # ---- glue: hi/lo split BEFORE framing (runs on the un-inflated signal), then the
    # strided overlapping-frame gather.
    # TODO(synk): at production sizes (n_fft=4096, hop=1024) replace this gather with
    # in-kernel hop-chunk accumulation (extra grid axis r over n_fft//hop shifted,
    # non-overlapping hop-chunks contracted against basis[r*hop:(r+1)*hop, :]) to remove
    # the n_fft/hop-x HBM inflation of the framed signal.
    xf = x.reshape(B * C, T).astype(jnp.float32)
    x_hi = xf.astype(jnp.bfloat16)
    x_lo = (xf - x_hi.astype(jnp.float32)).astype(jnp.bfloat16)
    idx = jnp.arange(n_frames)[:, None] * n_hop + jnp.arange(n_fft)[None, :]

    def frame_pad(sig):
        fr = sig[:, idx].reshape(M, n_fft)
        return jnp.pad(fr, ((0, Mp - M), (0, Np - n_fft)))

    frames_hl = jnp.stack([frame_pad(x_hi), frame_pad(x_lo)], axis=0)   # (2, Mp, Np) bf16
    basis_hl = _basis_hl(n_fft, Np, Wp)                                  # (2, Np, Wp) bf16

    grid = (Mp // tm, Wp // tn, Np // tk)

    cost = pl.CostEstimate(
        flops=2 * 3 * Mp * Wp * Np,
        transcendentals=0,
        bytes_accessed=(2 * 2 * Mp * Np * (Wp // tn)     # frames hi/lo re-read per j tile
                        + 2 * 2 * Np * Wp * (Mp // tm)   # basis hi/lo re-read per i tile
                        + 4 * Mp * Wp),                  # output writeback
    )

    out = pl.pallas_call(
        _stft_matmul_kernel,
        out_shape=jax.ShapeDtypeStruct((Mp, Wp), jnp.float32),
        grid_spec=pltpu.PrefetchScalarGridSpec(
            num_scalar_prefetch=0,
            grid=grid,
            in_specs=[
                pl.BlockSpec((2, tm, tk), lambda i, j, kk: (0, i, kk)),   # frames hi/lo
                pl.BlockSpec((2, tk, tn), lambda i, j, kk: (0, kk, j)),   # basis hi/lo
            ],
            out_specs=pl.BlockSpec((tm, tn), lambda i, j, kk: (i, j)),
        ),
        compiler_params=pltpu.CompilerParams(
            dimension_semantics=("parallel", "parallel", "arbitrary"),
            vmem_limit_bytes=vmem_limit,
        ),
        cost_estimate=cost,
    )(frames_hl, basis_hl)

    # ---- glue: slice + reshape to torch layout (B, C, n_bins, n_frames, 2) ----
    out = out[:M, :W].reshape(B, C, n_frames, n_bins, 2)
    return jnp.transpose(out, (0, 1, 3, 2, 4))


def stft_reference(x, n_fft=256, n_hop=64):
    """Pure-JAX reference mirroring torch.stft(center=False, onesided=True, hann window)."""
    B, C, T = x.shape
    n_frames = 1 + (T - n_fft) // n_hop
    xf = x.reshape(B * C, T)
    idx = jnp.arange(n_frames)[:, None] * n_hop + jnp.arange(n_fft)[None, :]
    frames = xf[:, idx]                                          # (B*C, F, n_fft)
    n = jnp.arange(n_fft, dtype=jnp.float32)
    window = 0.5 - 0.5 * jnp.cos(2.0 * jnp.pi * n / n_fft)
    spec = jnp.fft.rfft(frames * window[None, None, :], axis=-1)
    real = spec.real.reshape(B, C, n_frames, -1).transpose(0, 1, 3, 2)
    imag = spec.imag.reshape(B, C, n_frames, -1).transpose(0, 1, 3, 2)
    return jnp.stack([real, imag], axis=-1).astype(jnp.float32)


if __name__ == "__main__":
    # Small shapes consistent with the module: (nb_samples, nb_channels, nb_timesteps).
    # Scaled-down n_fft/n_hop so the test stays small (module defaults are 4096/1024).
    B, C, T = 2, 2, 1024
    n_fft, n_hop = 256, 64

    key = jax.random.PRNGKey(0)
    x = jax.random.normal(key, (B, C, T), dtype=jnp.float32) * 0.5

    out = jax.block_until_ready(stft_pallas(x, n_fft=n_fft, n_hop=n_hop))
    ref = stft_reference(x, n_fft=n_fft, n_hop=n_hop)

    assert out.shape == (B, C, n_fft // 2 + 1, 1 + (T - n_fft) // n_hop, 2), out.shape
    np.testing.assert_allclose(np.asarray(out), np.asarray(ref), rtol=1e-3, atol=1e-3)

    print("KERNEL_OK")
</pallas_src>

<mosaic_0001>
module attributes {stable_mosaic.version = 11 : i64} {
  func.func @_stft_matmul_kernel(%arg0: i32, %arg1: i32, %arg2: i32, %arg3: memref<2x64x256xbf16, #tpu.memory_space<vmem>>, %arg4: memref<2x256x384xbf16, #tpu.memory_space<vmem>>, %arg5: memref<64x384xf32, #tpu.memory_space<vmem>>) attributes {dimension_semantics = [#tpu.dimension_semantics<parallel>, #tpu.dimension_semantics<parallel>, #tpu.dimension_semantics<arbitrary>], iteration_bounds = array<i64: 1, 1, 1>, scalar_prefetch = 0 : i64, scratch_operands = 0 : i64, tpu.core_type = #tpu.core_type<tc>, window_params = [{transform_indices = @transform_0, window_bounds = array<i64: 2, 64, 256>}, {transform_indices = @transform_1, window_bounds = array<i64: 2, 256, 384>}, {transform_indices = @transform_2, window_bounds = array<i64: 64, 384>}]} {
    %c0 = arith.constant 0 : index
    %c0_0 = arith.constant 0 : index
    %c0_1 = arith.constant 0 : index
    %0 = vector.load %arg3[%c0, %c0_0, %c0_1] : memref<2x64x256xbf16, #tpu.memory_space<vmem>>, vector<1x64x256xbf16>
    %1 = vector.shape_cast %0 : vector<1x64x256xbf16> to vector<64x256xbf16>
    %c1 = arith.constant 1 : index
    %c0_2 = arith.constant 0 : index
    %c0_3 = arith.constant 0 : index
    %2 = vector.load %arg3[%c1, %c0_2, %c0_3] : memref<2x64x256xbf16, #tpu.memory_space<vmem>>, vector<1x64x256xbf16>
    %3 = vector.shape_cast %2 : vector<1x64x256xbf16> to vector<64x256xbf16>
    %c0_4 = arith.constant 0 : index
    %c0_5 = arith.constant 0 : index
    %c0_6 = arith.constant 0 : index
    %4 = vector.load %arg4[%c0_4, %c0_5, %c0_6] : memref<2x256x384xbf16, #tpu.memory_space<vmem>>, vector<1x256x384xbf16>
    %5 = vector.shape_cast %4 : vector<1x256x384xbf16> to vector<256x384xbf16>
    %c1_7 = arith.constant 1 : index
    %c0_8 = arith.constant 0 : index
    %c0_9 = arith.constant 0 : index
    %6 = vector.load %arg4[%c1_7, %c0_8, %c0_9] : memref<2x256x384xbf16, #tpu.memory_space<vmem>>, vector<1x256x384xbf16>
    %7 = vector.shape_cast %6 : vector<1x256x384xbf16> to vector<256x384xbf16>
    %cst = arith.constant dense<0.000000e+00> : vector<64x384xf32>
    %8 = tpu.matmul %1, %5, %cst {dimension_numbers = #tpu.dot_dimension_numbers<[1], [0], [0], [1], [0, 0, 1, 1], [], []>} : vector<64x256xbf16>, vector<256x384xbf16>, vector<64x384xf32> -> vector<64x384xf32>
    %cst_10 = arith.constant dense<0.000000e+00> : vector<64x384xf32>
    %9 = tpu.matmul %3, %5, %cst_10 {dimension_numbers = #tpu.dot_dimension_numbers<[1], [0], [0], [1], [0, 0, 1, 1], [], []>} : vector<64x256xbf16>, vector<256x384xbf16>, vector<64x384xf32> -> vector<64x384xf32>
    %10 = arith.addf %8, %9 : vector<64x384xf32>
    %cst_11 = arith.constant dense<0.000000e+00> : vector<64x384xf32>
    %11 = tpu.matmul %1, %7, %cst_11 {dimension_numbers = #tpu.dot_dimension_numbers<[1], [0], [0], [1], [0, 0, 1, 1], [], []>} : vector<64x256xbf16>, vector<256x384xbf16>, vector<64x384xf32> -> vector<64x384xf32>
    %12 = arith.addf %10, %11 : vector<64x384xf32>
    %c0_i32 = arith.constant 0 : i32
    %13 = arith.cmpi eq, %arg2, %c0_i32 : i32
    %14 = arith.extui %13 : i1 to i32
    %c0_i32_12 = arith.constant 0 : i32
    %15 = arith.cmpi ne, %14, %c0_i32_12 : i32
    scf.if %15 {
      %c0_15 = arith.constant 0 : index
      %c0_16 = arith.constant 0 : index
      %19 = vector.load %arg5[%c0_15, %c0_16] : memref<64x384xf32, #tpu.memory_space<vmem>>, vector<64x384xf32>
      tpu.vector_store %arg5[%c0_15, %c0_16], %12 {strides = array<i32>} : memref<64x384xf32, #tpu.memory_space<vmem>>, vector<64x384xf32>,
    } else {
    }
    %c0_i32_13 = arith.constant 0 : i32
    %16 = arith.cmpi sgt, %arg2, %c0_i32_13 : i32
    %17 = arith.extui %16 : i1 to i32
    %c0_i32_14 = arith.constant 0 : i32
    %18 = arith.cmpi ne, %17, %c0_i32_14 : i32
    scf.if %18 {
      %c0_15 = arith.constant 0 : index
      %c0_16 = arith.constant 0 : index
      %19 = vector.load %arg5[%c0_15, %c0_16] : memref<64x384xf32, #tpu.memory_space<vmem>>, vector<64x384xf32>
      %20 = arith.addf %19, %12 : vector<64x384xf32>
      %c0_17 = arith.constant 0 : index
      %c0_18 = arith.constant 0 : index
      %21 = vector.load %arg5[%c0_17, %c0_18] : memref<64x384xf32, #tpu.memory_space<vmem>>, vector<64x384xf32>
      tpu.vector_store %arg5[%c0_17, %c0_18], %20 {strides = array<i32>} : memref<64x384xf32, #tpu.memory_space<vmem>>, vector<64x384xf32>,
    } else {
    }
    return
  }
  func.func @transform_0(%arg0: i32, %arg1: i32, %arg2: i32) -> (i32, i32, i32) {
    %c0_i32 = arith.constant 0 : i32
    %c0_i32_0 = arith.constant 0 : i32
    return %c0_i32, %arg0, %arg2 : i32, i32, i32
  }
  func.func @transform_1(%arg0: i32, %arg1: i32, %arg2: i32) -> (i32, i32, i32) {
    %c0_i32 = arith.constant 0 : i32
    %c0_i32_0 = arith.constant 0 : i32
    return %c0_i32, %arg2, %arg1 : i32, i32, i32
  }
  func.func @transform_2(%arg0: i32, %arg1: i32, %arg2: i32) -> (i32, i32) {
    %c0_i32 = arith.constant 0 : i32
    return %arg0, %arg1 : i32, i32
  }
}

</mosaic_0001>

<llo_original>
// kernel: tpu_custom_call.1
$region0: #{tpu_custom_call.1}
  #allocation0 [shape = 'u32[]', space=smem, size = 0x4, offset = 0x4, fixed_abs, tag = 'smem constant byte address 0x4 - core index']
  #allocation1 [shape = 'u32[144,128]{1,0:T(1,128)}', space=vmem, size = 0x12000, scoped, tag = 'internal scratch']
  %s0 = inlined_call_operand.hbm [shape: bf16[2,64,256], index: 0, kind: input, shape index: {}]
  %s1 = inlined_call_operand.hbm [shape: bf16[2,256,384], index: 1, kind: input, shape index: {}]
  %s2 = inlined_call_operand.hbm [shape: f32[64,384], index: 2, kind: output, shape index: {}]
  %s3 = sld [smem:[#allocation0]]
  $region34: #{tpu_custom_call.1} parent=0
    _
  %s5 = ssub.s32 1, %s3
  %s6 = scalar_select 0, %s5, %s3
  $region1: #{tpu_custom_call.1} parent=0
    #allocation2 [shape = 'u8[65536]{0}', space=vmem, size = 0x10000, scoped, tag = 'input window, operand 0, single buffered']
    #allocation3 [shape = 's32[1]{0}', space=sflag, size = 0x4, scoped, tag = 'scoped memory for tpu_custom_call.1']
    #allocation4 [shape = 's32[1]{0}', space=sflag, size = 0x4, scoped, tag = 'scoped memory for tpu_custom_call.1']
    #allocation5 [shape = 'u8[393216]{0}', space=vmem, size = 0x60000, scoped, tag = 'input window, operand 1, single buffered']
    #allocation6 [shape = 's32[1]{0}', space=sflag, size = 0x4, scoped, tag = 'scoped memory for tpu_custom_call.1']
    #allocation7 [shape = 'u8[98304]{0}', space=vmem, size = 0x18000, scoped, tag = 'output window, operand 0, single buffered']
    %7 = vsyncpa [#allocation3], 0
    %8 = vsyncpa [#allocation6], 0
    %9 = vsyncpa [#allocation4], 0
    // Predicated region
    $region2: #{tpu_custom_call.1} parent=1 // pred_check
      _
    $region3: #{tpu_custom_call.1} parent=1 // pred_check_branch
      %11 = sbr.rel (0) target = $region5
    $region4: #{tpu_custom_call.1} parent=1 // pred_region
      %s13 = ssub.s32 2048, 2048
      %14 = vsyncadd [#allocation3], %s13
      %s15 = sshll.u32 [#allocation2], 4
      %s16 = int_to_ptr.vmem [resolvable:$true] %s15
      %21 = dma.hbm_to_vmem [thread:$0]  %s0, 2048, %s16, [#allocation3], 128, 128, 8
    $region5: #{tpu_custom_call.1} parent=1 // pred_fallthru
      _
    // Predicated region
    $region6: #{tpu_custom_call.1} parent=1 // pred_check
      _
    $region7: #{tpu_custom_call.1} parent=1 // pred_check_branch
      %23 = sbr.rel (0) target = $region9
    $region8: #{tpu_custom_call.1} parent=1 // pred_region
      %s25 = ssub.s32 12288, 12288
      %26 = vsyncadd [#allocation6], %s25
      %s27 = sshll.u32 [#allocation5], 4
      %s28 = int_to_ptr.vmem [resolvable:$true] %s27
      %33 = dma.hbm_to_vmem [thread:$0]  %s1, 12288, %s28, [#allocation6], 192, 192, 12
    $region9: #{tpu_custom_call.1} parent=1 // pred_fallthru
      _
    // Predicated region
    $region10: #{tpu_custom_call.1} parent=1 // pred_check
      _
    $region11: #{tpu_custom_call.1} parent=1 // pred_check_branch
      %35 = sbr.rel (0) target = $region13
    $region12: #{tpu_custom_call.1} parent=1 // pred_region
      %36 = dma.done [#allocation3], 2048
    $region13: #{tpu_custom_call.1} parent=1 // pred_fallthru
      _
    // Predicated region
    $region14: #{tpu_custom_call.1} parent=1 // pred_check
      _
    $region15: #{tpu_custom_call.1} parent=1 // pred_check_branch
      %38 = sbr.rel (0) target = $region17
    $region16: #{tpu_custom_call.1} parent=1 // pred_region
      %39 = dma.done [#allocation6], 12288
    $region17: #{tpu_custom_call.1} parent=1 // pred_fallthru
      _
    %v41 = vld [vmem:[#allocation2] sm:$0xff]
    %v42 = vld [vmem:[#allocation2 + $0x8] sm:$0xff]
    %v43 = vld [vmem:[#allocation2 + $0x10] sm:$0xff]
    %v44 = vld [vmem:[#allocation2 + $0x18] sm:$0xff]
    %v45 = vld [vmem:[#allocation2 + $0x20] sm:$0xff]
    %v46 = vld [vmem:[#allocation2 + $0x28] sm:$0xff]
    %v47 = vld [vmem:[#allocation2 + $0x30] sm:$0xff]
    %v48 = vld [vmem:[#allocation2 + $0x38] sm:$0xff]
    %s49 = scalar_lea.vmem [#allocation2], 64
    %v50 = vld [vmem:[%s49] sm:$0xff]
    %v51 = vld [vmem:[%s49 + $0x8] sm:$0xff]
    %v52 = vld [vmem:[%s49 + $0x10] sm:$0xff]
    %v53 = vld [vmem:[%s49 + $0x18] sm:$0xff]
    %v54 = vld [vmem:[%s49 + $0x20] sm:$0xff]
    %v55 = vld [vmem:[%s49 + $0x28] sm:$0xff]
    %v56 = vld [vmem:[%s49 + $0x30] sm:$0xff]
    %v57 = vld [vmem:[%s49 + $0x38] sm:$0xff]
    %v58 = vld [vmem:[#allocation5] sm:$0xff]
    %v59 = vld [vmem:[#allocation5 + $0x8] sm:$0xf]
    %v60 = vld [vmem:[#allocation5 + $0xc] sm:$0xff]
    %v61 = vld [vmem:[#allocation5 + $0x14] sm:$0xf]
    %v62 = vld [vmem:[#allocation5 + $0x18] sm:$0xff]
    %v63 = vld [vmem:[#allocation5 + $0x20] sm:$0xf]
    %v64 = vld [vmem:[#allocation5 + $0x24] sm:$0xff]
    %v65 = vld [vmem:[#allocation5 + $0x2c] sm:$0xf]
    %v66 = vld [vmem:[#allocation5 + $0x30] sm:$0xff]
    %v67 = vld [vmem:[#allocation5 + $0x38] sm:$0xf]
    %v68 = vld [vmem:[#allocation5 + $0x3c] sm:$0xff]
    %v69 = vld [vmem:[#allocation5 + $0x44] sm:$0xf]
    %v70 = vld [vmem:[#allocation5 + $0x48] sm:$0xff]
    %v71 = vld [vmem:[#allocation5 + $0x50] sm:$0xf]
    %v72 = vld [vmem:[#allocation5 + $0x54] sm:$0xff]
    %v73 = vld [vmem:[#allocation5 + $0x5c] sm:$0xf]
    %v74 = vld [vmem:[#allocation5 + $0x60] sm:$0xff]
    %v75 = vld [vmem:[#allocation5 + $0x68] sm:$0xf]
    %v76 = vld [vmem:[#allocation5 + $0x6c] sm:$0xff]
    %v77 = vld [vmem:[#allocation5 + $0x74] sm:$0xf]
    %v78 = vld [vmem:[#allocation5 + $0x78] sm:$0xff]
    %v79 = vld [vmem:[#allocation5 + $0x80] sm:$0xf]
    %v80 = vld [vmem:[#allocation5 + $0x84] sm:$0xff]
    %v81 = vld [vmem:[#allocation5 + $0x8c] sm:$0xf]
    %v82 = vld [vmem:[#allocation5 + $0x90] sm:$0xff]
    %v83 = vld [vmem:[#allocation5 + $0x98] sm:$0xf]
    %v84 = vld [vmem:[#allocation5 + $0x9c] sm:$0xff]
    %v85 = vld [vmem:[#allocation5 + $0xa4] sm:$0xf]
    %v86 = vld [vmem:[#allocation5 + $0xa8] sm:$0xff]
    %v87 = vld [vmem:[#allocation5 + $0xb0] sm:$0xf]
    %v88 = vld [vmem:[#allocation5 + $0xb4] sm:$0xff]
    %v89 = vld [vmem:[#allocation5 + $0xbc] sm:$0xf]
    %v90 = vld [vmem:[#allocation5 + $0xc0] sm:$0xff]
    %v91 = vld [vmem:[#allocation5 + $0xc8] sm:$0xf]
    %v92 = vld [vmem:[#allocation5 + $0xcc] sm:$0xff]
    %v93 = vld [vmem:[#allocation5 + $0xd4] sm:$0xf]
    %v94 = vld [vmem:[#allocation5 + $0xd8] sm:$0xff]
    %v95 = vld [vmem:[#allocation5 + $0xe0] sm:$0xf]
    %v96 = vld [vmem:[#allocation5 + $0xe4] sm:$0xff]
    %v97 = vld [vmem:[#allocation5 + $0xec] sm:$0xf]
    %v98 = vld [vmem:[#allocation5 + $0xf0] sm:$0xff]
    %v99 = vld [vmem:[#allocation5 + $0xf8] sm:$0xf]
    %v100 = vld [vmem:[#allocation5 + $0xfc] sm:$0xff]
    %v101 = vld [vmem:[#allocation5 + $0x104] sm:$0xf]
    %v102 = vld [vmem:[#allocation5 + $0x108] sm:$0xff]
    %v103 = vld [vmem:[#allocation5 + $0x110] sm:$0xf]
    %v104 = vld [vmem:[#allocation5 + $0x114] sm:$0xff]
    %v105 = vld [vmem:[#allocation5 + $0x11c] sm:$0xf]
    %v106 = vld [vmem:[#allocation5 + $0x120] sm:$0xff]
    %v107 = vld [vmem:[#allocation5 + $0x128] sm:$0xf]
    %v108 = vld [vmem:[#allocation5 + $0x12c] sm:$0xff]
    %v109 = vld [vmem:[#allocation5 + $0x134] sm:$0xf]
    %v110 = vld [vmem:[#allocation5 + $0x138] sm:$0xff]
    %v111 = vld [vmem:[#allocation5 + $0x140] sm:$0xf]
    %v112 = vld [vmem:[#allocation5 + $0x144] sm:$0xff]
    %v113 = vld [vmem:[#allocation5 + $0x14c] sm:$0xf]
    %v114 = vld [vmem:[#allocation5 + $0x150] sm:$0xff]
    %v115 = vld [vmem:[#allocation5 + $0x158] sm:$0xf]
    %v116 = vld [vmem:[#allocation5 + $0x15c] sm:$0xff]
    %v117 = vld [vmem:[#allocation5 + $0x164] sm:$0xf]
    %v118 = vld [vmem:[#allocation5 + $0x168] sm:$0xff]
    %v119 = vld [vmem:[#allocation5 + $0x170] sm:$0xf]
    %v120 = vld [vmem:[#allocation5 + $0x174] sm:$0xff]
    %v121 = vld [vmem:[#allocation5 + $0x17c] sm:$0xf]
    %s122 = scalar_lea.vmem [#allocation5], 384
    %v123 = vld [vmem:[%s122] sm:$0xff]
    %v124 = vld [vmem:[%s122 + $0x8] sm:$0xf]
    %v125 = vld [vmem:[%s122 + $0xc] sm:$0xff]
    %v126 = vld [vmem:[%s122 + $0x14] sm:$0xf]
    %v127 = vld [vmem:[%s122 + $0x18] sm:$0xff]
    %v128 = vld [vmem:[%s122 + $0x20] sm:$0xf]
    %v129 = vld [vmem:[%s122 + $0x24] sm:$0xff]
    %v130 = vld [vmem:[%s122 + $0x2c] sm:$0xf]
    %v131 = vld [vmem:[%s122 + $0x30] sm:$0xff]
    %v132 = vld [vmem:[%s122 + $0x38] sm:$0xf]
    %v133 = vld [vmem:[%s122 + $0x3c] sm:$0xff]
    %v134 = vld [vmem:[%s122 + $0x44] sm:$0xf]
    %v135 = vld [vmem:[%s122 + $0x48] sm:$0xff]
    %v136 = vld [vmem:[%s122 + $0x50] sm:$0xf]
    %v137 = vld [vmem:[%s122 + $0x54] sm:$0xff]
    %v138 = vld [vmem:[%s122 + $0x5c] sm:$0xf]
    %v139 = vld [vmem:[%s122 + $0x60] sm:$0xff]
    %v140 = vld [vmem:[%s122 + $0x68] sm:$0xf]
    %v141 = vld [vmem:[%s122 + $0x6c] sm:$0xff]
    %v142 = vld [vmem:[%s122 + $0x74] sm:$0xf]
    %v143 = vld [vmem:[%s122 + $0x78] sm:$0xff]
    %v144 = vld [vmem:[%s122 + $0x80] sm:$0xf]
    %v145 = vld [vmem:[%s122 + $0x84] sm:$0xff]
    %v146 = vld [vmem:[%s122 + $0x8c] sm:$0xf]
    %v147 = vld [vmem:[%s122 + $0x90] sm:$0xff]
    %v148 = vld [vmem:[%s122 + $0x98] sm:$0xf]
    %v149 = vld [vmem:[%s122 + $0x9c] sm:$0xff]
    %v150 = vld [vmem:[%s122 + $0xa4] sm:$0xf]
    %v151 = vld [vmem:[%s122 + $0xa8] sm:$0xff]
    %v152 = vld [vmem:[%s122 + $0xb0] sm:$0xf]
    %v153 = vld [vmem:[%s122 + $0xb4] sm:$0xff]
    %v154 = vld [vmem:[%s122 + $0xbc] sm:$0xf]
    %v155 = vld [vmem:[%s122 + $0xc0] sm:$0xff]
    %v156 = vld [vmem:[%s122 + $0xc8] sm:$0xf]
    %v157 = vld [vmem:[%s122 + $0xcc] sm:$0xff]
    %v158 = vld [vmem:[%s122 + $0xd4] sm:$0xf]
    %v159 = vld [vmem:[%s122 + $0xd8] sm:$0xff]
    %v160 = vld [vmem:[%s122 + $0xe0] sm:$0xf]
    %v161 = vld [vmem:[%s122 + $0xe4] sm:$0xff]
    %v162 = vld [vmem:[%s122 + $0xec] sm:$0xf]
    %v163 = vld [vmem:[%s122 + $0xf0] sm:$0xff]
    %v164 = vld [vmem:[%s122 + $0xf8] sm:$0xf]
    %v165 = vld [vmem:[%s122 + $0xfc] sm:$0xff]
    %v166 = vld [vmem:[%s122 + $0x104] sm:$0xf]
    %v167 = vld [vmem:[%s122 + $0x108] sm:$0xff]
    %v168 = vld [vmem:[%s122 + $0x110] sm:$0xf]
    %v169 = vld [vmem:[%s122 + $0x114] sm:$0xff]
    %v170 = vld [vmem:[%s122 + $0x11c] sm:$0xf]
    %v171 = vld [vmem:[%s122 + $0x120] sm:$0xff]
    %v172 = vld [vmem:[%s122 + $0x128] sm:$0xf]
    %v173 = vld [vmem:[%s122 + $0x12c] sm:$0xff]
    %v174 = vld [vmem:[%s122 + $0x134] sm:$0xf]
    %v175 = vld [vmem:[%s122 + $0x138] sm:$0xff]
    %v176 = vld [vmem:[%s122 + $0x140] sm:$0xf]
    %v177 = vld [vmem:[%s122 + $0x144] sm:$0xff]
    %v178 = vld [vmem:[%s122 + $0x14c] sm:$0xf]
    %v179 = vld [vmem:[%s122 + $0x150] sm:$0xff]
    %v180 = vld [vmem:[%s122 + $0x158] sm:$0xf]
    %v181 = vld [vmem:[%s122 + $0x15c] sm:$0xff]
    %v182 = vld [vmem:[%s122 + $0x164] sm:$0xf]
    %v183 = vld [vmem:[%s122 + $0x168] sm:$0xff]
    %v184 = vld [vmem:[%s122 + $0x170] sm:$0xf]
    %v185 = vld [vmem:[%s122 + $0x174] sm:$0xff]
    %v186 = vld [vmem:[%s122 + $0x17c] sm:$0xf]
    %v195 = vunpack.c.l.b16 %v50
    %v196 = vunpack.c.h.b16 %v50
    %v197 = vunpack.c.l.b16 %v51
    %v198 = vunpack.c.h.b16 %v51
    %v199 = vunpack.c.l.b16 %v52
    %v200 = vunpack.c.h.b16 %v52
    %v201 = vunpack.c.l.b16 %v53
    %v202 = vunpack.c.h.b16 %v53
    %v203 = vunpack.c.l.b16 %v54
    %v204 = vunpack.c.h.b16 %v54
    %v205 = vunpack.c.l.b16 %v55
    %v206 = vunpack.c.h.b16 %v55
    %v207 = vunpack.c.l.b16 %v56
    %v208 = vunpack.c.h.b16 %v56
    %v209 = vunpack.c.l.b16 %v57
    %v210 = vunpack.c.h.b16 %v57
    %v211 = vpack.c.b16 %v197, %v195
    %v212 = vpack.c.b16 %v198, %v196
    %v213 = vpack.c.b16 %v201, %v199
    %v214 = vpack.c.b16 %v202, %v200
    %v215 = vpack.c.b16 %v205, %v203
    %v216 = vpack.c.b16 %v206, %v204
    %v217 = vpack.c.b16 %v209, %v207
    %v218 = vpack.c.b16 %v210, %v208
    %v291 = vunpack.c.l.b16 %v58
    %v292 = vunpack.c.h.b16 %v58
    %v293 = vunpack.c.l.b16 %v59
    %v294 = vunpack.c.l.b16 %v60
    %v295 = vunpack.c.h.b16 %v60
    %v296 = vunpack.c.l.b16 %v61
    %v297 = vunpack.c.l.b16 %v62
    %v298 = vunpack.c.h.b16 %v62
    %v299 = vunpack.c.l.b16 %v63
    %v300 = vunpack.c.l.b16 %v64
    %v301 = vunpack.c.h.b16 %v64
    %v302 = vunpack.c.l.b16 %v65
    %v303 = vunpack.c.l.b16 %v66
    %v304 = vunpack.c.h.b16 %v66
    %v305 = vunpack.c.l.b16 %v67
    %v306 = vunpack.c.l.b16 %v68
    %v307 = vunpack.c.h.b16 %v68
    %v308 = vunpack.c.l.b16 %v69
    %v309 = vunpack.c.l.b16 %v70
    %v310 = vunpack.c.h.b16 %v70
    %v311 = vunpack.c.l.b16 %v71
    %v312 = vunpack.c.l.b16 %v72
    %v313 = vunpack.c.h.b16 %v72
    %v314 = vunpack.c.l.b16 %v73
    %v315 = vunpack.c.l.b16 %v74
    %v316 = vunpack.c.h.b16 %v74
    %v317 = vunpack.c.l.b16 %v75
    %v318 = vunpack.c.l.b16 %v76
    %v319 = vunpack.c.h.b16 %v76
    %v320 = vunpack.c.l.b16 %v77
    %v321 = vunpack.c.l.b16 %v78
    %v322 = vunpack.c.h.b16 %v78
    %v323 = vunpack.c.l.b16 %v79
    %v324 = vunpack.c.l.b16 %v80
    %v325 = vunpack.c.h.b16 %v80
    %v326 = vunpack.c.l.b16 %v81
    %v327 = vunpack.c.l.b16 %v82
    %v328 = vunpack.c.h.b16 %v82
    %v329 = vunpack.c.l.b16 %v83
    %v330 = vunpack.c.l.b16 %v84
    %v331 = vunpack.c.h.b16 %v84
    %v332 = vunpack.c.l.b16 %v85
    %v333 = vunpack.c.l.b16 %v86
    %v334 = vunpack.c.h.b16 %v86
    %v335 = vunpack.c.l.b16 %v87
    %v336 = vunpack.c.l.b16 %v88
    %v337 = vunpack.c.h.b16 %v88
    %v338 = vunpack.c.l.b16 %v89
    %v339 = vunpack.c.l.b16 %v90
    %v340 = vunpack.c.h.b16 %v90
    %v341 = vunpack.c.l.b16 %v91
    %v342 = vunpack.c.l.b16 %v92
    %v343 = vunpack.c.h.b16 %v92
    %v344 = vunpack.c.l.b16 %v93
    %v345 = vunpack.c.l.b16 %v94
    %v346 = vunpack.c.h.b16 %v94
    %v347 = vunpack.c.l.b16 %v95
    %v348 = vunpack.c.l.b16 %v96
    %v349 = vunpack.c.h.b16 %v96
    %v350 = vunpack.c.l.b16 %v97
    %v351 = vunpack.c.l.b16 %v98
    %v352 = vunpack.c.h.b16 %v98
    %v353 = vunpack.c.l.b16 %v99
    %v354 = vunpack.c.l.b16 %v100
    %v355 = vunpack.c.h.b16 %v100
    %v356 = vunpack.c.l.b16 %v101
    %v357 = vunpack.c.l.b16 %v102
    %v358 = vunpack.c.h.b16 %v102
    %v359 = vunpack.c.l.b16 %v103
    %v360 = vunpack.c.l.b16 %v104
    %v361 = vunpack.c.h.b16 %v104
    %v362 = vunpack.c.l.b16 %v105
    %v363 = vunpack.c.l.b16 %v106
    %v364 = vunpack.c.h.b16 %v106
    %v365 = vunpack.c.l.b16 %v107
    %v366 = vunpack.c.l.b16 %v108
    %v367 = vunpack.c.h.b16 %v108
    %v368 = vunpack.c.l.b16 %v109
    %v369 = vunpack.c.l.b16 %v110
    %v370 = vunpack.c.h.b16 %v110
    %v371 = vunpack.c.l.b16 %v111
    %v372 = vunpack.c.l.b16 %v112
    %v373 = vunpack.c.h.b16 %v112
    %v374 = vunpack.c.l.b16 %v113
    %v375 = vunpack.c.l.b16 %v114
    %v376 = vunpack.c.h.b16 %v114
    %v377 = vunpack.c.l.b16 %v115
    %v378 = vunpack.c.l.b16 %v116
    %v379 = vunpack.c.h.b16 %v116
    %v380 = vunpack.c.l.b16 %v117
    %v381 = vunpack.c.l.b16 %v118
    %v382 = vunpack.c.h.b16 %v118
    %v383 = vunpack.c.l.b16 %v119
    %v384 = vunpack.c.l.b16 %v120
    %v385 = vunpack.c.h.b16 %v120
    %v386 = vunpack.c.l.b16 %v121
    %v387 = vpack.c.b16 %v294, %v291
    %v388 = vpack.c.b16 %v295, %v292
    %v389 = vpack.c.b16 %v296, %v293
    %v390 = vpack.c.b16 %v300, %v297
    %v391 = vpack.c.b16 %v301, %v298
    %v392 = vpack.c.b16 %v302, %v299
    %v393 = vpack.c.b16 %v306, %v303
    %v394 = vpack.c.b16 %v307, %v304
    %v395 = vpack.c.b16 %v308, %v305
    %v396 = vpack.c.b16 %v312, %v309
    %v397 = vpack.c.b16 %v313, %v310
    %v398 = vpack.c.b16 %v314, %v311
    %v399 = vpack.c.b16 %v318, %v315
    %v400 = vpack.c.b16 %v319, %v316
    %v401 = vpack.c.b16 %v320, %v317
    %v402 = vpack.c.b16 %v324, %v321
    %v403 = vpack.c.b16 %v325, %v322
    %v404 = vpack.c.b16 %v326, %v323
    %v405 = vpack.c.b16 %v330, %v327
    %v406 = vpack.c.b16 %v331, %v328
    %v407 = vpack.c.b16 %v332, %v329
    %v408 = vpack.c.b16 %v336, %v333
    %v409 = vpack.c.b16 %v337, %v334
    %v410 = vpack.c.b16 %v338, %v335
    %v411 = vpack.c.b16 %v342, %v339
    %v412 = vpack.c.b16 %v343, %v340
    %v413 = vpack.c.b16 %v344, %v341
    %v414 = vpack.c.b16 %v348, %v345
    %v415 = vpack.c.b16 %v349, %v346
    %v416 = vpack.c.b16 %v350, %v347
    %v417 = vpack.c.b16 %v354, %v351
    %v418 = vpack.c.b16 %v355, %v352
    %v419 = vpack.c.b16 %v356, %v353
    %v420 = vpack.c.b16 %v360, %v357
    %v421 = vpack.c.b16 %v361, %v358
    %v422 = vpack.c.b16 %v362, %v359
    %v423 = vpack.c.b16 %v366, %v363
    %v424 = vpack.c.b16 %v367, %v364
    %v425 = vpack.c.b16 %v368, %v365
    %v426 = vpack.c.b16 %v372, %v369
    %v427 = vpack.c.b16 %v373, %v370
    %v428 = vpack.c.b16 %v374, %v371
    %v429 = vpack.c.b16 %v378, %v375
    %v430 = vpack.c.b16 %v379, %v376
    %v431 = vpack.c.b16 %v380, %v377
    %v432 = vpack.c.b16 %v384, %v381
    %v433 = vpack.c.b16 %v385, %v382
    %v434 = vpack.c.b16 %v386, %v383
    %483 = vmatprep.subr.bf16.mxu0 %v388
    %484 = vmatpush1.bf16.msra.mxu0 %v387
    %485 = vmatprep.subr.bf16.mxu0 %v391
    %486 = vmatpush1.bf16.msra.mxu0 %v390
    %487 = vmatprep.subr.bf16.mxu0 %v394
    %488 = vmatpush1.bf16.msra.mxu0 %v393
    %489 = vmatprep.subr.bf16.mxu0 %v397
    %490 = vmatpush1.bf16.msra.mxu0 %v396
    %491 = vmatprep.subr.bf16.mxu0 %v400
    %492 = vmatpush1.bf16.msra.mxu0 %v399
    %493 = vmatprep.subr.bf16.mxu0 %v403
    %494 = vmatpush1.bf16.msra.mxu0 %v402
    %495 = vmatprep.subr.bf16.mxu0 %v406
    %496 = vmatpush1.bf16.msra.mxu0 %v405
    %497 = vmatprep.subr.bf16.mxu0 %v409
    %498 = vmatpush1.bf16.msra.mxu0 %v408
    %499 = vmatprep.subr.bf16.mxu0 %v412
    %500 = vmatpush1.bf16.msra.mxu0 %v411
    %501 = vmatprep.subr.bf16.mxu0 %v415
    %502 = vmatpush1.bf16.msra.mxu0 %v414
    %503 = vmatprep.subr.bf16.mxu0 %v418
    %504 = vmatpush1.bf16.msra.mxu0 %v417
    %505 = vmatprep.subr.bf16.mxu0 %v421
    %506 = vmatpush1.bf16.msra.mxu0 %v420
    %507 = vmatprep.subr.bf16.mxu0 %v424
    %508 = vmatpush1.bf16.msra.mxu0 %v423
    %509 = vmatprep.subr.bf16.mxu0 %v427
    %510 = vmatpush1.bf16.msra.mxu0 %v426
    %511 = vmatprep.subr.bf16.mxu0 %v430
    %512 = vmatpush1.bf16.msra.mxu0 %v429
    %513 = vmatprep.subr.bf16.mxu0 %v433
    %514 = vmatpush1.bf16.msra.mxu0 %v432
    %515 = vmatprep.mubr.bf16.mxu0 %v212
    %516 = vmatmul.mubr.bf16.gmra.mrb[0].mxu0 %v211
    %v517 = vpop.f32.mrb[0].mxu0
    %v518 = vadd.f32 0.0, %v517
    %v519 = vpop.f32.mrb[0].mxu0
    %v520 = vadd.f32 0.0, %v519
    %v521 = vpop.f32.mrb[0].mxu0
    %v522 = vadd.f32 0.0, %v521
    %v523 = vpop.f32.mrb[0].mxu0
    %v524 = vadd.f32 0.0, %v523
    %525 = vmatprep.mubr.bf16.mxu0 %v214
    %526 = vmatmul.mubr.bf16.gmra.mrb[0].mxu0 %v213
    %v527 = vpop.f32.mrb[0].mxu0
    %v528 = vadd.f32 0.0, %v527
    %v529 = vpop.f32.mrb[0].mxu0
    %v530 = vadd.f32 0.0, %v529
    %v531 = vpop.f32.mrb[0].mxu0
    %v532 = vadd.f32 0.0, %v531
    %v533 = vpop.f32.mrb[0].mxu0
    %v534 = vadd.f32 0.0, %v533
    %535 = vmatprep.mubr.bf16.mxu0 %v216
    %536 = vmatmul.mubr.bf16.gmra.mrb[0].mxu0 %v215
    %v537 = vpop.f32.mrb[0].mxu0
    %v538 = vadd.f32 0.0, %v537
    %v539 = vpop.f32.mrb[0].mxu0
    %v540 = vadd.f32 0.0, %v539
    %v541 = vpop.f32.mrb[0].mxu0
    %v542 = vadd.f32 0.0, %v541
    %v543 = vpop.f32.mrb[0].mxu0
    %v544 = vadd.f32 0.0, %v543
    %545 = vmatprep.mubr.bf16.mxu0 %v218
    %546 = vmatmul.mubr.bf16.gmra.mrb[0].mxu0 %v217
    %v547 = vpop.f32.mrb[0].mxu0
    %v548 = vadd.f32 0.0, %v547
    %v549 = vpop.f32.mrb[0].mxu0
    %v550 = vadd.f32 0.0, %v549
    %v551 = vpop.f32.mrb[0].mxu0
    %v552 = vadd.f32 0.0, %v551
    %v553 = vpop.f32.mrb[0].mxu0
    %v554 = vadd.f32 0.0, %v553
    %555 = vdwg.mxu0
    %556 = vmatprep.subr.bf16.mxu0 0
    %557 = vmatpush1.bf16.msra.mxu0 %v389
    %558 = vmatprep.subr.bf16.mxu0 0
    %559 = vmatpush1.bf16.msra.mxu0 %v392
    %560 = vmatprep.subr.bf16.mxu0 0
    %561 = vmatpush1.bf16.msra.mxu0 %v395
    %562 = vmatprep.subr.bf16.mxu0 0
    %563 = vmatpush1.bf16.msra.mxu0 %v398
    %564 = vmatprep.subr.bf16.mxu0 0
    %565 = vmatpush1.bf16.msra.mxu0 %v401
    %566 = vmatprep.subr.bf16.mxu0 0
    %567 = vmatpush1.bf16.msra.mxu0 %v404
    %568 = vmatprep.subr.bf16.mxu0 0
    %569 = vmatpush1.bf16.msra.mxu0 %v407
    %570 = vmatprep.subr.bf16.mxu0 0
    %571 = vmatpush1.bf16.msra.mxu0 %v410
    %572 = vmatprep.subr.bf16.mxu0 0
    %573 = vmatpush1.bf16.msra.mxu0 %v413
    %574 = vmatprep.subr.bf16.mxu0 0
    %575 = vmatpush1.bf16.msra.mxu0 %v416
    %576 = vmatprep.subr.bf16.mxu0 0
    %577 = vmatpush1.bf16.msra.mxu0 %v419
    %578 = vmatprep.subr.bf16.mxu0 0
    %579 = vmatpush1.bf16.msra.mxu0 %v422
    %580 = vmatprep.subr.bf16.mxu0 0
    %581 = vmatpush1.bf16.msra.mxu0 %v425
    %582 = vmatprep.subr.bf16.mxu0 0
    %583 = vmatpush1.bf16.msra.mxu0 %v428
    %584 = vmatprep.subr.bf16.mxu0 0
    %585 = vmatpush1.bf16.msra.mxu0 %v431
    %586 = vmatprep.subr.bf16.mxu0 0
    %587 = vmatpush1.bf16.msra.mxu0 %v434
    %588 = vmatprep.mubr.bf16.mxu0 %v212
    %589 = vmatmul.mubr.bf16.gmra.mrb[0].mxu0 %v211
    %v590 = vpop.f32.mrb[0].mxu0
    %v591 = vadd.f32 0.0, %v590
    %v592 = vpop.f32.mrb[0].mxu0
    %v593 = vpop.f32.mrb[0].mxu0
    %v594 = vadd.f32 0.0, %v593
    %v595 = vpop.f32.mrb[0].mxu0
    %596 = vmatprep.mubr.bf16.mxu0 %v214
    %597 = vmatmul.mubr.bf16.gmra.mrb[0].mxu0 %v213
    %v598 = vpop.f32.mrb[0].mxu0
    %v599 = vadd.f32 0.0, %v598
    %v600 = vpop.f32.mrb[0].mxu0
    %v601 = vpop.f32.mrb[0].mxu0
    %v602 = vadd.f32 0.0, %v601
    %v603 = vpop.f32.mrb[0].mxu0
    %604 = vmatprep.mubr.bf16.mxu0 %v216
    %605 = vmatmul.mubr.bf16.gmra.mrb[0].mxu0 %v215
    %v606 = vpop.f32.mrb[0].mxu0
    %v607 = vadd.f32 0.0, %v606
    %v608 = vpop.f32.mrb[0].mxu0
    %v609 = vpop.f32.mrb[0].mxu0
    %v610 = vadd.f32 0.0, %v609
    %v611 = vpop.f32.mrb[0].mxu0
    %612 = vmatprep.mubr.bf16.mxu0 %v218
    %613 = vmatmul.mubr.bf16.gmra.mrb[0].mxu0 %v217
    %v614 = vpop.f32.mrb[0].mxu0
    %v615 = vadd.f32 0.0, %v614
    %v616 = vpop.f32.mrb[0].mxu0
    %v617 = vpop.f32.mrb[0].mxu0
    %v618 = vadd.f32 0.0, %v617
    %v619 = vpop.f32.mrb[0].mxu0
    %620 = vdwg.mxu0
    %v629 = vunpack.c.l.b16 %v41
    %v630 = vunpack.c.h.b16 %v41
    %v631 = vunpack.c.l.b16 %v42
    %v632 = vunpack.c.h.b16 %v42
    %v633 = vunpack.c.l.b16 %v43
    %v634 = vunpack.c.h.b16 %v43
    %v635 = vunpack.c.l.b16 %v44
    %v636 = vunpack.c.h.b16 %v44
    %v637 = vunpack.c.l.b16 %v45
    %v638 = vunpack.c.h.b16 %v45
    %v639 = vunpack.c.l.b16 %v46
    %v640 = vunpack.c.h.b16 %v46
    %v641 = vunpack.c.l.b16 %v47
    %v642 = vunpack.c.h.b16 %v47
    %v643 = vunpack.c.l.b16 %v48
    %v644 = vunpack.c.h.b16 %v48
    %v645 = vpack.c.b16 %v631, %v629
    %v646 = vpack.c.b16 %v632, %v630
    %v647 = vpack.c.b16 %v635, %v633
    %v648 = vpack.c.b16 %v636, %v634
    %v649 = vpack.c.b16 %v639, %v637
    %v650 = vpack.c.b16 %v640, %v638
    %v651 = vpack.c.b16 %v643, %v641
    %v652 = vpack.c.b16 %v644, %v642
    %661 = vmatprep.subr.bf16.mxu0 %v388
    %662 = vmatpush1.bf16.msra.mxu0 %v387
    %663 = vmatprep.subr.bf16.mxu0 %v391
    %664 = vmatpush1.bf16.msra.mxu0 %v390
    %665 = vmatprep.subr.bf16.mxu0 %v394
    %666 = vmatpush1.bf16.msra.mxu0 %v393
    %667 = vmatprep.subr.bf16.mxu0 %v397
    %668 = vmatpush1.bf16.msra.mxu0 %v396
    %669 = vmatprep.subr.bf16.mxu0 %v400
    %670 = vmatpush1.bf16.msra.mxu0 %v399
    %671 = vmatprep.subr.bf16.mxu0 %v403
    %672 = vmatpush1.bf16.msra.mxu0 %v402
    %673 = vmatprep.subr.bf16.mxu0 %v406
    %674 = vmatpush1.bf16.msra.mxu0 %v405
    %675 = vmatprep.subr.bf16.mxu0 %v409
    %676 = vmatpush1.bf16.msra.mxu0 %v408
    %677 = vmatprep.subr.bf16.mxu0 %v412
    %678 = vmatpush1.bf16.msra.mxu0 %v411
    %679 = vmatprep.subr.bf16.mxu0 %v415
    %680 = vmatpush1.bf16.msra.mxu0 %v414
    %681 = vmatprep.subr.bf16.mxu0 %v418
    %682 = vmatpush1.bf16.msra.mxu0 %v417
    %683 = vmatprep.subr.bf16.mxu0 %v421
    %684 = vmatpush1.bf16.msra.mxu0 %v420
    %685 = vmatprep.subr.bf16.mxu0 %v424
    %686 = vmatpush1.bf16.msra.mxu0 %v423
    %687 = vmatprep.subr.bf16.mxu0 %v427
    %688 = vmatpush1.bf16.msra.mxu0 %v426
    %689 = vmatprep.subr.bf16.mxu0 %v430
    %690 = vmatpush1.bf16.msra.mxu0 %v429
    %691 = vmatprep.subr.bf16.mxu0 %v433
    %692 = vmatpush1.bf16.msra.mxu0 %v432
    %693 = vmatprep.mubr.bf16.mxu0 %v646
    %694 = vmatmul.mubr.bf16.gmra.mrb[0].mxu0 %v645
    %v695 = vpop.f32.mrb[0].mxu0
    %v696 = vadd.f32 %v518, %v695
    %v697 = vpop.f32.mrb[0].mxu0
    %v698 = vadd.f32 %v520, %v697
    %v699 = vpop.f32.mrb[0].mxu0
    %v700 = vadd.f32 %v522, %v699
    %v701 = vpop.f32.mrb[0].mxu0
    %v702 = vadd.f32 %v524, %v701
    %703 = vmatprep.mubr.bf16.mxu0 %v648
    %704 = vmatmul.mubr.bf16.gmra.mrb[0].mxu0 %v647
    %v705 = vpop.f32.mrb[0].mxu0
    %v706 = vadd.f32 %v528, %v705
    %v707 = vpop.f32.mrb[0].mxu0
    %v708 = vadd.f32 %v530, %v707
    %v709 = vpop.f32.mrb[0].mxu0
    %v710 = vadd.f32 %v532, %v709
    %v711 = vpop.f32.mrb[0].mxu0
    %v712 = vadd.f32 %v534, %v711
    %713 = vmatprep.mubr.bf16.mxu0 %v650
    %714 = vmatmul.mubr.bf16.gmra.mrb[0].mxu0 %v649
    %v715 = vpop.f32.mrb[0].mxu0
    %v716 = vadd.f32 %v538, %v715
    %v717 = vpop.f32.mrb[0].mxu0
    %v718 = vadd.f32 %v540, %v717
    %v719 = vpop.f32.mrb[0].mxu0
    %v720 = vadd.f32 %v542, %v719
    %v721 = vpop.f32.mrb[0].mxu0
    %v722 = vadd.f32 %v544, %v721
    %723 = vmatprep.mubr.bf16.mxu0 %v652
    %724 = vmatmul.mubr.bf16.gmra.mrb[0].mxu0 %v651
    %v725 = vpop.f32.mrb[0].mxu0
    %v726 = vadd.f32 %v548, %v725
    %v727 = vpop.f32.mrb[0].mxu0
    %v728 = vadd.f32 %v550, %v727
    %v729 = vpop.f32.mrb[0].mxu0
    %v730 = vadd.f32 %v552, %v729
    %v731 = vpop.f32.mrb[0].mxu0
    %v732 = vadd.f32 %v554, %v731
    %733 = vdwg.mxu0
    %734 = vmatprep.subr.bf16.mxu0 0
    %735 = vmatpush1.bf16.msra.mxu0 %v389
    %736 = vmatprep.subr.bf16.mxu0 0
    %737 = vmatpush1.bf16.msra.mxu0 %v392
    %738 = vmatprep.subr.bf16.mxu0 0
    %739 = vmatpush1.bf16.msra.mxu0 %v395
    %740 = vmatprep.subr.bf16.mxu0 0
    %741 = vmatpush1.bf16.msra.mxu0 %v398
    %742 = vmatprep.subr.bf16.mxu0 0
    %743 = vmatpush1.bf16.msra.mxu0 %v401
    %744 = vmatprep.subr.bf16.mxu0 0
    %745 = vmatpush1.bf16.msra.mxu0 %v404
    %746 = vmatprep.subr.bf16.mxu0 0
    %747 = vmatpush1.bf16.msra.mxu0 %v407
    %748 = vmatprep.subr.bf16.mxu0 0
    %749 = vmatpush1.bf16.msra.mxu0 %v410
    %750 = vmatprep.subr.bf16.mxu0 0
    %751 = vmatpush1.bf16.msra.mxu0 %v413
    %752 = vmatprep.subr.bf16.mxu0 0
    %753 = vmatpush1.bf16.msra.mxu0 %v416
    %754 = vmatprep.subr.bf16.mxu0 0
    %755 = vmatpush1.bf16.msra.mxu0 %v419
    %756 = vmatprep.subr.bf16.mxu0 0
    %757 = vmatpush1.bf16.msra.mxu0 %v422
    %758 = vmatprep.subr.bf16.mxu0 0
    %759 = vmatpush1.bf16.msra.mxu0 %v425
    %760 = vmatprep.subr.bf16.mxu0 0
    %761 = vmatpush1.bf16.msra.mxu0 %v428
    %762 = vmatprep.subr.bf16.mxu0 0
    %763 = vmatpush1.bf16.msra.mxu0 %v431
    %764 = vmatprep.subr.bf16.mxu0 0
    %765 = vmatpush1.bf16.msra.mxu0 %v434
    %766 = vmatprep.mubr.bf16.mxu0 %v646
    %767 = vmatmul.mubr.bf16.gmra.mrb[0].mxu0 %v645
    %v768 = vpop.f32.mrb[0].mxu0
    %v769 = vadd.f32 %v591, %v768
    %v770 = vpop.f32.mrb[0].mxu0
    %v771 = vpop.f32.mrb[0].mxu0
    %v772 = vadd.f32 %v594, %v771
    %v773 = vpop.f32.mrb[0].mxu0
    %774 = vmatprep.mubr.bf16.mxu0 %v648
    %775 = vmatmul.mubr.bf16.gmra.mrb[0].mxu0 %v647
    %v776 = vpop.f32.mrb[0].mxu0
    %v777 = vadd.f32 %v599, %v776
    %v778 = vpop.f32.mrb[0].mxu0
    %v779 = vpop.f32.mrb[0].mxu0
    %v780 = vadd.f32 %v602, %v779
    %v781 = vpop.f32.mrb[0].mxu0
    %782 = vmatprep.mubr.bf16.mxu0 %v650
    %783 = vmatmul.mubr.bf16.gmra.mrb[0].mxu0 %v649
    %v784 = vpop.f32.mrb[0].mxu0
    %v785 = vadd.f32 %v607, %v784
    %v786 = vpop.f32.mrb[0].mxu0
    %v787 = vpop.f32.mrb[0].mxu0
    %v788 = vadd.f32 %v610, %v787
    %v789 = vpop.f32.mrb[0].mxu0
    %790 = vmatprep.mubr.bf16.mxu0 %v652
    %791 = vmatmul.mubr.bf16.gmra.mrb[0].mxu0 %v651
    %v792 = vpop.f32.mrb[0].mxu0
    %v793 = vadd.f32 %v615, %v792
    %v794 = vpop.f32.mrb[0].mxu0
    %v795 = vpop.f32.mrb[0].mxu0
    %v796 = vadd.f32 %v618, %v795
    %v797 = vpop.f32.mrb[0].mxu0
    %798 = vdwg.mxu0
    %v863 = vunpack.c.l.b16 %v123
    %v864 = vunpack.c.h.b16 %v123
    %v865 = vunpack.c.l.b16 %v124
    %v866 = vunpack.c.l.b16 %v125
    %v867 = vunpack.c.h.b16 %v125
    %v868 = vunpack.c.l.b16 %v126
    %v869 = vunpack.c.l.b16 %v127
    %v870 = vunpack.c.h.b16 %v127
    %v871 = vunpack.c.l.b16 %v128
    %v872 = vunpack.c.l.b16 %v129
    %v873 = vunpack.c.h.b16 %v129
    %v874 = vunpack.c.l.b16 %v130
    %v875 = vunpack.c.l.b16 %v131
    %v876 = vunpack.c.h.b16 %v131
    %v877 = vunpack.c.l.b16 %v132
    %v878 = vunpack.c.l.b16 %v133
    %v879 = vunpack.c.h.b16 %v133
    %v880 = vunpack.c.l.b16 %v134
    %v881 = vunpack.c.l.b16 %v135
    %v882 = vunpack.c.h.b16 %v135
    %v883 = vunpack.c.l.b16 %v136
    %v884 = vunpack.c.l.b16 %v137
    %v885 = vunpack.c.h.b16 %v137
    %v886 = vunpack.c.l.b16 %v138
    %v887 = vunpack.c.l.b16 %v139
    %v888 = vunpack.c.h.b16 %v139
    %v889 = vunpack.c.l.b16 %v140
    %v890 = vunpack.c.l.b16 %v141
    %v891 = vunpack.c.h.b16 %v141
    %v892 = vunpack.c.l.b16 %v142
    %v893 = vunpack.c.l.b16 %v143
    %v894 = vunpack.c.h.b16 %v143
    %v895 = vunpack.c.l.b16 %v144
    %v896 = vunpack.c.l.b16 %v145
    %v897 = vunpack.c.h.b16 %v145
    %v898 = vunpack.c.l.b16 %v146
    %v899 = vunpack.c.l.b16 %v147
    %v900 = vunpack.c.h.b16 %v147
    %v901 = vunpack.c.l.b16 %v148
    %v902 = vunpack.c.l.b16 %v149
    %v903 = vunpack.c.h.b16 %v149
    %v904 = vunpack.c.l.b16 %v150
    %v905 = vunpack.c.l.b16 %v151
    %v906 = vunpack.c.h.b16 %v151
    %v907 = vunpack.c.l.b16 %v152
    %v908 = vunpack.c.l.b16 %v153
    %v909 = vunpack.c.h.b16 %v153
    %v910 = vunpack.c.l.b16 %v154
    %v911 = vunpack.c.l.b16 %v155
    %v912 = vunpack.c.h.b16 %v155
    %v913 = vunpack.c.l.b16 %v156
    %v914 = vunpack.c.l.b16 %v157
    %v915 = vunpack.c.h.b16 %v157
    %v916 = vunpack.c.l.b16 %v158
    %v917 = vunpack.c.l.b16 %v159
    %v918 = vunpack.c.h.b16 %v159
    %v919 = vunpack.c.l.b16 %v160
    %v920 = vunpack.c.l.b16 %v161
    %v921 = vunpack.c.h.b16 %v161
    %v922 = vunpack.c.l.b16 %v162
    %v923 = vunpack.c.l.b16 %v163
    %v924 = vunpack.c.h.b16 %v163
    %v925 = vunpack.c.l.b16 %v164
    %v926 = vunpack.c.l.b16 %v165
    %v927 = vunpack.c.h.b16 %v165
    %v928 = vunpack.c.l.b16 %v166
    %v929 = vunpack.c.l.b16 %v167
    %v930 = vunpack.c.h.b16 %v167
    %v931 = vunpack.c.l.b16 %v168
    %v932 = vunpack.c.l.b16 %v169
    %v933 = vunpack.c.h.b16 %v169
    %v934 = vunpack.c.l.b16 %v170
    %v935 = vunpack.c.l.b16 %v171
    %v936 = vunpack.c.h.b16 %v171
    %v937 = vunpack.c.l.b16 %v172
    %v938 = vunpack.c.l.b16 %v173
    %v939 = vunpack.c.h.b16 %v173
    %v940 = vunpack.c.l.b16 %v174
    %v941 = vunpack.c.l.b16 %v175
    %v942 = vunpack.c.h.b16 %v175
    %v943 = vunpack.c.l.b16 %v176
    %v944 = vunpack.c.l.b16 %v177
    %v945 = vunpack.c.h.b16 %v177
    %v946 = vunpack.c.l.b16 %v178
    %v947 = vunpack.c.l.b16 %v179
    %v948 = vunpack.c.h.b16 %v179
    %v949 = vunpack.c.l.b16 %v180
    %v950 = vunpack.c.l.b16 %v181
    %v951 = vunpack.c.h.b16 %v181
    %v952 = vunpack.c.l.b16 %v182
    %v953 = vunpack.c.l.b16 %v183
    %v954 = vunpack.c.h.b16 %v183
    %v955 = vunpack.c.l.b16 %v184
    %v956 = vunpack.c.l.b16 %v185
    %v957 = vunpack.c.h.b16 %v185
    %v958 = vunpack.c.l.b16 %v186
    %v959 = vpack.c.b16 %v866, %v863
    %v960 = vpack.c.b16 %v867, %v864
    %v961 = vpack.c.b16 %v868, %v865
    %v962 = vpack.c.b16 %v872, %v869
    %v963 = vpack.c.b16 %v873, %v870
    %v964 = vpack.c.b16 %v874, %v871
    %v965 = vpack.c.b16 %v878, %v875
    %v966 = vpack.c.b16 %v879, %v876
    %v967 = vpack.c.b16 %v880, %v877
    %v968 = vpack.c.b16 %v884, %v881
    %v969 = vpack.c.b16 %v885, %v882
    %v970 = vpack.c.b16 %v886, %v883
    %v971 = vpack.c.b16 %v890, %v887
    %v972 = vpack.c.b16 %v891, %v888
    %v973 = vpack.c.b16 %v892, %v889
    %v974 = vpack.c.b16 %v896, %v893
    %v975 = vpack.c.b16 %v897, %v894
    %v976 = vpack.c.b16 %v898, %v895
    %v977 = vpack.c.b16 %v902, %v899
    %v978 = vpack.c.b16 %v903, %v900
    %v979 = vpack.c.b16 %v904, %v901
    %v980 = vpack.c.b16 %v908, %v905
    %v981 = vpack.c.b16 %v909, %v906
    %v982 = vpack.c.b16 %v910, %v907
    %v983 = vpack.c.b16 %v914, %v911
    %v984 = vpack.c.b16 %v915, %v912
    %v985 = vpack.c.b16 %v916, %v913
    %v986 = vpack.c.b16 %v920, %v917
    %v987 = vpack.c.b16 %v921, %v918
    %v988 = vpack.c.b16 %v922, %v919
    %v989 = vpack.c.b16 %v926, %v923
    %v990 = vpack.c.b16 %v927, %v924
    %v991 = vpack.c.b16 %v928, %v925
    %v992 = vpack.c.b16 %v932, %v929
    %v993 = vpack.c.b16 %v933, %v930
    %v994 = vpack.c.b16 %v934, %v931
    %v995 = vpack.c.b16 %v938, %v935
    %v996 = vpack.c.b16 %v939, %v936
    %v997 = vpack.c.b16 %v940, %v937
    %v998 = vpack.c.b16 %v944, %v941
    %v999 = vpack.c.b16 %v945, %v942
    %v1000 = vpack.c.b16 %v946, %v943
    %v1001 = vpack.c.b16 %v950, %v947
    %v1002 = vpack.c.b16 %v951, %v948
    %v1003 = vpack.c.b16 %v952, %v949
    %v1004 = vpack.c.b16 %v956, %v953
    %v1005 = vpack.c.b16 %v957, %v954
    %v1006 = vpack.c.b16 %v958, %v955
    %1055 = vmatprep.subr.bf16.mxu0 %v960
    %1056 = vmatpush1.bf16.msra.mxu0 %v959
    %1057 = vmatprep.subr.bf16.mxu0 %v963
    %1058 = vmatpush1.bf16.msra.mxu0 %v962
    %1059 = vmatprep.subr.bf16.mxu0 %v966
    %1060 = vmatpush1.bf16.msra.mxu0 %v965
    %1061 = vmatprep.subr.bf16.mxu0 %v969
    %1062 = vmatpush1.bf16.msra.mxu0 %v968
    %1063 = vmatprep.subr.bf16.mxu0 %v972
    %1064 = vmatpush1.bf16.msra.mxu0 %v971
    %1065 = vmatprep.subr.bf16.mxu0 %v975
    %1066 = vmatpush1.bf16.msra.mxu0 %v974
    %1067 = vmatprep.subr.bf16.mxu0 %v978
    %1068 = vmatpush1.bf16.msra.mxu0 %v977
    %1069 = vmatprep.subr.bf16.mxu0 %v981
    %1070 = vmatpush1.bf16.msra.mxu0 %v980
    %1071 = vmatprep.subr.bf16.mxu0 %v984
    %1072 = vmatpush1.bf16.msra.mxu0 %v983
    %1073 = vmatprep.subr.bf16.mxu0 %v987
    %1074 = vmatpush1.bf16.msra.mxu0 %v986
    %1075 = vmatprep.subr.bf16.mxu0 %v990
    %1076 = vmatpush1.bf16.msra.mxu0 %v989
    %1077 = vmatprep.subr.bf16.mxu0 %v993
    %1078 = vmatpush1.bf16.msra.mxu0 %v992
    %1079 = vmatprep.subr.bf16.mxu0 %v996
    %1080 = vmatpush1.bf16.msra.mxu0 %v995
    %1081 = vmatprep.subr.bf16.mxu0 %v999
    %1082 = vmatpush1.bf16.msra.mxu0 %v998
    %1083 = vmatprep.subr.bf16.mxu0 %v1002
    %1084 = vmatpush1.bf16.msra.mxu0 %v1001
    %1085 = vmatprep.subr.bf16.mxu0 %v1005
    %1086 = vmatpush1.bf16.msra.mxu0 %v1004
    %1087 = vmatprep.mubr.bf16.mxu0 %v646
    %1088 = vmatmul.mubr.bf16.gmra.mrb[0].mxu0 %v645
    %v1089 = vpop.f32.mrb[0].mxu0
    %v1090 = vadd.f32 0.0, %v1089
    %v1091 = vpop.f32.mrb[0].mxu0
    %v1092 = vadd.f32 0.0, %v1091
    %v1093 = vpop.f32.mrb[0].mxu0
    %v1094 = vadd.f32 0.0, %v1093
    %v1095 = vpop.f32.mrb[0].mxu0
    %v1096 = vadd.f32 0.0, %v1095
    %1097 = vmatprep.mubr.bf16.mxu0 %v648
    %1098 = vmatmul.mubr.bf16.gmra.mrb[0].mxu0 %v647
    %v1099 = vpop.f32.mrb[0].mxu0
    %v1100 = vadd.f32 0.0, %v1099
    %v1101 = vpop.f32.mrb[0].mxu0
    %v1102 = vadd.f32 0.0, %v1101
    %v1103 = vpop.f32.mrb[0].mxu0
    %v1104 = vadd.f32 0.0, %v1103
    %v1105 = vpop.f32.mrb[0].mxu0
    %v1106 = vadd.f32 0.0, %v1105
    %1107 = vmatprep.mubr.bf16.mxu0 %v650
    %1108 = vmatmul.mubr.bf16.gmra.mrb[0].mxu0 %v649
    %v1109 = vpop.f32.mrb[0].mxu0
    %v1110 = vadd.f32 0.0, %v1109
    %v1111 = vpop.f32.mrb[0].mxu0
    %v1112 = vadd.f32 0.0, %v1111
    %v1113 = vpop.f32.mrb[0].mxu0
    %v1114 = vadd.f32 0.0, %v1113
    %v1115 = vpop.f32.mrb[0].mxu0
    %v1116 = vadd.f32 0.0, %v1115
    %1117 = vmatprep.mubr.bf16.mxu0 %v652
    %1118 = vmatmul.mubr.bf16.gmra.mrb[0].mxu0 %v651
    %v1119 = vpop.f32.mrb[0].mxu0
    %v1120 = vadd.f32 0.0, %v1119
    %v1121 = vpop.f32.mrb[0].mxu0
    %v1122 = vadd.f32 0.0, %v1121
    %v1123 = vpop.f32.mrb[0].mxu0
    %v1124 = vadd.f32 0.0, %v1123
    %v1125 = vpop.f32.mrb[0].mxu0
    %v1126 = vadd.f32 0.0, %v1125
    %1127 = vdwg.mxu0
    %1128 = vmatprep.subr.bf16.mxu0 0
    %1129 = vmatpush1.bf16.msra.mxu0 %v961
    %1130 = vmatprep.subr.bf16.mxu0 0
    %1131 = vmatpush1.bf16.msra.mxu0 %v964
    %1132 = vmatprep.subr.bf16.mxu0 0
    %1133 = vmatpush1.bf16.msra.mxu0 %v967
    %1134 = vmatprep.subr.bf16.mxu0 0
    %1135 = vmatpush1.bf16.msra.mxu0 %v970
    %1136 = vmatprep.subr.bf16.mxu0 0
    %1137 = vmatpush1.bf16.msra.mxu0 %v973
    %1138 = vmatprep.subr.bf16.mxu0 0
    %1139 = vmatpush1.bf16.msra.mxu0 %v976
    %1140 = vmatprep.subr.bf16.mxu0 0
    %1141 = vmatpush1.bf16.msra.mxu0 %v979
    %1142 = vmatprep.subr.bf16.mxu0 0
    %1143 = vmatpush1.bf16.msra.mxu0 %v982
    %1144 = vmatprep.subr.bf16.mxu0 0
    %1145 = vmatpush1.bf16.msra.mxu0 %v985
    %1146 = vmatprep.subr.bf16.mxu0 0
    %1147 = vmatpush1.bf16.msra.mxu0 %v988
    %1148 = vmatprep.subr.bf16.mxu0 0
    %1149 = vmatpush1.bf16.msra.mxu0 %v991
    %1150 = vmatprep.subr.bf16.mxu0 0
    %1151 = vmatpush1.bf16.msra.mxu0 %v994
    %1152 = vmatprep.subr.bf16.mxu0 0
    %1153 = vmatpush1.bf16.msra.mxu0 %v997
    %1154 = vmatprep.subr.bf16.mxu0 0
    %1155 = vmatpush1.bf16.msra.mxu0 %v1000
    %1156 = vmatprep.subr.bf16.mxu0 0
    %1157 = vmatpush1.bf16.msra.mxu0 %v1003
    %1158 = vmatprep.subr.bf16.mxu0 0
    %1159 = vmatpush1.bf16.msra.mxu0 %v1006
    %1160 = vmatprep.mubr.bf16.mxu0 %v646
    %1161 = vmatmul.mubr.bf16.gmra.mrb[0].mxu0 %v645
    %v1162 = vpop.f32.mrb[0].mxu0
    %v1163 = vadd.f32 0.0, %v1162
    %v1164 = vpop.f32.mrb[0].mxu0
    %v1165 = vpop.f32.mrb[0].mxu0
    %v1166 = vadd.f32 0.0, %v1165
    %v1167 = vpop.f32.mrb[0].mxu0
    %1168 = vmatprep.mubr.bf16.mxu0 %v648
    %1169 = vmatmul.mubr.bf16.gmra.mrb[0].mxu0 %v647
    %v1170 = vpop.f32.mrb[0].mxu0
    %v1171 = vadd.f32 0.0, %v1170
    %v1172 = vpop.f32.mrb[0].mxu0
    %v1173 = vpop.f32.mrb[0].mxu0
    %v1174 = vadd.f32 0.0, %v1173
    %v1175 = vpop.f32.mrb[0].mxu0
    %1176 = vmatprep.mubr.bf16.mxu0 %v650
    %1177 = vmatmul.mubr.bf16.gmra.mrb[0].mxu0 %v649
    %v1178 = vpop.f32.mrb[0].mxu0
    %v1179 = vadd.f32 0.0, %v1178
    %v1180 = vpop.f32.mrb[0].mxu0
    %v1181 = vpop.f32.mrb[0].mxu0
    %v1182 = vadd.f32 0.0, %v1181
    %v1183 = vpop.f32.mrb[0].mxu0
    %1184 = vmatprep.mubr.bf16.mxu0 %v652
    %1185 = vmatmul.mubr.bf16.gmra.mrb[0].mxu0 %v651
    %v1186 = vpop.f32.mrb[0].mxu0
    %v1187 = vadd.f32 0.0, %v1186
    %v1188 = vpop.f32.mrb[0].mxu0
    %v1189 = vpop.f32.mrb[0].mxu0
    %v1190 = vadd.f32 0.0, %v1189
    %v1191 = vpop.f32.mrb[0].mxu0
    %1192 = vdwg.mxu0
    %v1193 = vadd.f32 %v696, %v1090
    %v1194 = vadd.f32 %v698, %v1092
    %v1195 = vadd.f32 %v769, %v1163
    %v1196 = vadd.f32 %v700, %v1094
    %v1197 = vadd.f32 %v702, %v1096
    %v1198 = vadd.f32 %v772, %v1166
    %v1199 = vadd.f32 %v706, %v1100
    %v1200 = vadd.f32 %v708, %v1102
    %v1201 = vadd.f32 %v777, %v1171
    %v1202 = vadd.f32 %v710, %v1104
    %v1203 = vadd.f32 %v712, %v1106
    %v1204 = vadd.f32 %v780, %v1174
    %v1205 = vadd.f32 %v716, %v1110
    %v1206 = vadd.f32 %v718, %v1112
    %v1207 = vadd.f32 %v785, %v1179
    %v1208 = vadd.f32 %v720, %v1114
    %v1209 = vadd.f32 %v722, %v1116
    %v1210 = vadd.f32 %v788, %v1182
    %v1211 = vadd.f32 %v726, %v1120
    %v1212 = vadd.f32 %v728, %v1122
    %v1213 = vadd.f32 %v793, %v1187
    %v1214 = vadd.f32 %v730, %v1124
    %v1215 = vadd.f32 %v732, %v1126
    %v1216 = vadd.f32 %v796, %v1190
    %p1217 = scmp.eq.s32.totalorder 0, 0
    // Predicated region
    $region18: #{tpu_custom_call.1} parent=1 // pred_check
      %p1218 = pneg %p1217
    $region19: #{tpu_custom_call.1} parent=1 // pred_check_branch
      %1220 = sbr.rel (%p1218) target = $region21
    $region20: #{tpu_custom_call.1} parent=1 // pred_region
      %1221 = vst [vmem:[#allocation7] sm:$0xff] %v1193
      %1222 = vst [vmem:[#allocation7 + $0x8] sm:$0xff] %v1194
      %1223 = vst [vmem:[#allocation7 + $0x10] sm:$0xff] %v1195
      %1224 = vst [vmem:[#allocation7 + $0x18] sm:$0xff] %v1196
      %1225 = vst [vmem:[#allocation7 + $0x20] sm:$0xff] %v1197
      %1226 = vst [vmem:[#allocation7 + $0x28] sm:$0xff] %v1198
      %1227 = vst [vmem:[#allocation7 + $0x30] sm:$0xff] %v1199
      %1228 = vst [vmem:[#allocation7 + $0x38] sm:$0xff] %v1200
      %1229 = vst [vmem:[#allocation7 + $0x40] sm:$0xff] %v1201
      %1230 = vst [vmem:[#allocation7 + $0x48] sm:$0xff] %v1202
      %1231 = vst [vmem:[#allocation7 + $0x50] sm:$0xff] %v1203
      %1232 = vst [vmem:[#allocation7 + $0x58] sm:$0xff] %v1204
      %1233 = vst [vmem:[#allocation7 + $0x60] sm:$0xff] %v1205
      %1234 = vst [vmem:[#allocation7 + $0x68] sm:$0xff] %v1206
      %1235 = vst [vmem:[#allocation7 + $0x70] sm:$0xff] %v1207
      %1236 = vst [vmem:[#allocation7 + $0x78] sm:$0xff] %v1208
      %1237 = vst [vmem:[#allocation7 + $0x80] sm:$0xff] %v1209
      %1238 = vst [vmem:[#allocation7 + $0x88] sm:$0xff] %v1210
      %1239 = vst [vmem:[#allocation7 + $0x90] sm:$0xff] %v1211
      %1240 = vst [vmem:[#allocation7 + $0x98] sm:$0xff] %v1212
      %1241 = vst [vmem:[#allocation7 + $0xa0] sm:$0xff] %v1213
      %1242 = vst [vmem:[#allocation7 + $0xa8] sm:$0xff] %v1214
      %1243 = vst [vmem:[#allocation7 + $0xb0] sm:$0xff] %v1215
      %1244 = vst [vmem:[#allocation7 + $0xb8] sm:$0xff] %v1216
    $region21: #{tpu_custom_call.1} parent=1 // pred_fallthru
      _
    %p1245 = scmp.gt.s32.totalorder 0, 0
    // Predicated region
    $region22: #{tpu_custom_call.1} parent=1 // pred_check
      %p1246 = pneg %p1245
    $region23: #{tpu_custom_call.1} parent=1 // pred_check_branch
      %1248 = sbr.rel (%p1246) target = $region25
    $region24: #{tpu_custom_call.1} parent=1 // pred_region
      %v1249 = vld [vmem:[#allocation7] sm:$0xff]
      %v1250 = vld [vmem:[#allocation7 + $0x8] sm:$0xff]
      %v1251 = vld [vmem:[#allocation7 + $0x10] sm:$0xff]
      %v1252 = vld [vmem:[#allocation7 + $0x18] sm:$0xff]
      %v1253 = vld [vmem:[#allocation7 + $0x20] sm:$0xff]
      %v1254 = vld [vmem:[#allocation7 + $0x28] sm:$0xff]
      %v1255 = vld [vmem:[#allocation7 + $0x30] sm:$0xff]
      %v1256 = vld [vmem:[#allocation7 + $0x38] sm:$0xff]
      %v1257 = vld [vmem:[#allocation7 + $0x40] sm:$0xff]
      %v1258 = vld [vmem:[#allocation7 + $0x48] sm:$0xff]
      %v1259 = vld [vmem:[#allocation7 + $0x50] sm:$0xff]
      %v1260 = vld [vmem:[#allocation7 + $0x58] sm:$0xff]
      %v1261 = vld [vmem:[#allocation7 + $0x60] sm:$0xff]
      %v1262 = vld [vmem:[#allocation7 + $0x68] sm:$0xff]
      %v1263 = vld [vmem:[#allocation7 + $0x70] sm:$0xff]
      %v1264 = vld [vmem:[#allocation7 + $0x78] sm:$0xff]
      %v1265 = vld [vmem:[#allocation7 + $0x80] sm:$0xff]
      %v1266 = vld [vmem:[#allocation7 + $0x88] sm:$0xff]
      %v1267 = vld [vmem:[#allocation7 + $0x90] sm:$0xff]
      %v1268 = vld [vmem:[#allocation7 + $0x98] sm:$0xff]
      %v1269 = vld [vmem:[#allocation7 + $0xa0] sm:$0xff]
      %v1270 = vld [vmem:[#allocation7 + $0xa8] sm:$0xff]
      %v1271 = vld [vmem:[#allocation7 + $0xb0] sm:$0xff]
      %v1272 = vld [vmem:[#allocation7 + $0xb8] sm:$0xff]
      %v1273 = vadd.f32 %v1249, %v1193
      %v1274 = vadd.f32 %v1250, %v1194
      %v1275 = vadd.f32 %v1251, %v1195
      %v1276 = vadd.f32 %v1252, %v1196
      %v1277 = vadd.f32 %v1253, %v1197
      %v1278 = vadd.f32 %v1254, %v1198
      %v1279 = vadd.f32 %v1255, %v1199
      %v1280 = vadd.f32 %v1256, %v1200
      %v1281 = vadd.f32 %v1257, %v1201
      %v1282 = vadd.f32 %v1258, %v1202
      %v1283 = vadd.f32 %v1259, %v1203
      %v1284 = vadd.f32 %v1260, %v1204
      %v1285 = vadd.f32 %v1261, %v1205
      %v1286 = vadd.f32 %v1262, %v1206
      %v1287 = vadd.f32 %v1263, %v1207
      %v1288 = vadd.f32 %v1264, %v1208
      %v1289 = vadd.f32 %v1265, %v1209
      %v1290 = vadd.f32 %v1266, %v1210
      %v1291 = vadd.f32 %v1267, %v1211
      %v1292 = vadd.f32 %v1268, %v1212
      %v1293 = vadd.f32 %v1269, %v1213
      %v1294 = vadd.f32 %v1270, %v1214
      %v1295 = vadd.f32 %v1271, %v1215
      %v1296 = vadd.f32 %v1272, %v1216
      %1297 = vst [vmem:[#allocation7] sm:$0xff] %v1273
      %1298 = vst [vmem:[#allocation7 + $0x8] sm:$0xff] %v1274
      %1299 = vst [vmem:[#allocation7 + $0x10] sm:$0xff] %v1275
      %1300 = vst [vmem:[#allocation7 + $0x18] sm:$0xff] %v1276
      %1301 = vst [vmem:[#allocation7 + $0x20] sm:$0xff] %v1277
      %1302 = vst [vmem:[#allocation7 + $0x28] sm:$0xff] %v1278
      %1303 = vst [vmem:[#allocation7 + $0x30] sm:$0xff] %v1279
      %1304 = vst [vmem:[#allocation7 + $0x38] sm:$0xff] %v1280
      %1305 = vst [vmem:[#allocation7 + $0x40] sm:$0xff] %v1281
      %1306 = vst [vmem:[#allocation7 + $0x48] sm:$0xff] %v1282
      %1307 = vst [vmem:[#allocation7 + $0x50] sm:$0xff] %v1283
      %1308 = vst [vmem:[#allocation7 + $0x58] sm:$0xff] %v1284
      %1309 = vst [vmem:[#allocation7 + $0x60] sm:$0xff] %v1285
      %1310 = vst [vmem:[#allocation7 + $0x68] sm:$0xff] %v1286
      %1311 = vst [vmem:[#allocation7 + $0x70] sm:$0xff] %v1287
      %1312 = vst [vmem:[#allocation7 + $0x78] sm:$0xff] %v1288
      %1313 = vst [vmem:[#allocation7 + $0x80] sm:$0xff] %v1289
      %1314 = vst [vmem:[#allocation7 + $0x88] sm:$0xff] %v1290
      %1315 = vst [vmem:[#allocation7 + $0x90] sm:$0xff] %v1291
      %1316 = vst [vmem:[#allocation7 + $0x98] sm:$0xff] %v1292
      %1317 = vst [vmem:[#allocation7 + $0xa0] sm:$0xff] %v1293
      %1318 = vst [vmem:[#allocation7 + $0xa8] sm:$0xff] %v1294
      %1319 = vst [vmem:[#allocation7 + $0xb0] sm:$0xff] %v1295
      %1320 = vst [vmem:[#allocation7 + $0xb8] sm:$0xff] %v1296
    $region25: #{tpu_custom_call.1} parent=1 // pred_fallthru
      _
    // Predicated region
    $region26: #{tpu_custom_call.1} parent=1 // pred_check
      _
    $region27: #{tpu_custom_call.1} parent=1 // pred_check_branch
      %1322 = sbr.rel (0) target = $region29
    $region28: #{tpu_custom_call.1} parent=1 // pred_region
      %s1324 = ssub.s32 3072, 3072
      %1325 = vsyncadd [#allocation4], %s1324
      %s1326 = sshll.u32 [#allocation7], 4
      %s1327 = int_to_ptr.vmem [resolvable:$true] %s1326
      %1332 = dma.vmem_to_hbm [thread:$0]  %s1327, 3072, %s2, [#allocation4], 384, 384, 24
    $region29: #{tpu_custom_call.1} parent=1 // pred_fallthru
      _
    // Predicated region
    $region30: #{tpu_custom_call.1} parent=1 // pred_check
      _
    $region31: #{tpu_custom_call.1} parent=1 // pred_check_branch
      %1334 = sbr.rel (0) target = $region33
    $region32: #{tpu_custom_call.1} parent=1 // pred_region
      %1335 = dma.done [#allocation4], 3072
    $region33: #{tpu_custom_call.1} parent=1 // pred_fallthru
      _
    %1336 = vsyncpa [#allocation3], 1
    %1337 = vsyncpa [#allocation6], 1
    %1338 = vsyncpa [#allocation4], 1

</llo_original>
